<compile_context>
chip_gen: v7x
topology: tpu7x:2x2x1
jax: 0.10.0
libtpu: 0.0.40
codegen_flags: <defaults>
</compile_context>

<pallas_src>
import functools

import jax
import jax.numpy as jnp
from jax.experimental import pallas as pl
from jax.experimental.pallas import tpu as pltpu

_VMEM_LIMIT = 32 * 1024 * 1024  # explicit scoped-VMEM budget: safe on v5e..v7x


def _make_divisible(v, divisor=8, min_value=None):
    if min_value is None:
        min_value = divisor
    new_v = max(min_value, int(v + divisor / 2) // divisor * divisor)
    if new_v < 0.9 * v:
        new_v += divisor
    return new_v


def _choose_row_tile(m, bytes_per_row, budget=4 << 20):
    """Large row tiles (few-MiB blocks) but >= 2 grid steps so both v7x TCs get work."""
    if m <= 8:
        return m
    cap = max(8, (budget // max(bytes_per_row, 1)) // 8 * 8)
    tile = min(m, cap, 2048)
    if tile >= m:
        tile = max(8, pl.cdiv(pl.cdiv(m, 2), 8) * 8)
    else:
        tile = max(8, tile // 8 * 8)
    return tile


def _fold_bn(gamma, beta, mean, var, conv_bias, eps=1e-5):
    """Fold inference BatchNorm (+ preceding conv bias) into per-channel scale/shift."""
    inv = gamma * jax.lax.rsqrt(var + eps)
    return inv, beta + (conv_bias - mean) * inv


# --------------------------- pointwise (1x1 conv) kernels ---------------------------

def _pw_bn_prelu_kernel(x_ref, w_ref, scale_ref, shift_ref, alpha_ref, o_ref):
    y = jnp.dot(x_ref[...], w_ref[...], preferred_element_type=jnp.float32)
    y = y * scale_ref[...] + shift_ref[...]
    y = jnp.where(y >= 0.0, y, alpha_ref[...] * y)
    o_ref[...] = y.astype(o_ref.dtype)


def _pw_bn_kernel(x_ref, w_ref, scale_ref, shift_ref, o_ref):
    y = jnp.dot(x_ref[...], w_ref[...], preferred_element_type=jnp.float32)
    y = y * scale_ref[...] + shift_ref[...]
    o_ref[...] = y.astype(o_ref.dtype)


def _pw_bn_res_kernel(x_ref, w_ref, scale_ref, shift_ref, res_ref, o_ref):
    y = jnp.dot(x_ref[...], w_ref[...], preferred_element_type=jnp.float32)
    y = y * scale_ref[...] + shift_ref[...]
    y = y + res_ref[...].astype(jnp.float32)
    o_ref[...] = y.astype(o_ref.dtype)


def _pw_conv_bn(x2d, w_io, scale, shift, *, alpha=None, residual=None):
    """y = x2d @ w_io * scale + shift, optionally + PReLU or + residual (fused)."""
    m, cin = x2d.shape
    cout = w_io.shape[1]
    bytes_per_row = (cin + 2 * cout) * x2d.dtype.itemsize * 2  # in+out(+res), double-buffered
    tm = _choose_row_tile(m, bytes_per_row)
    grid = (pl.cdiv(m, tm),)

    in_specs = [
        pl.BlockSpec((tm, cin), lambda i: (i, 0)),
        pl.BlockSpec((cin, cout), lambda i: (0, 0)),
        pl.BlockSpec((1, cout), lambda i: (0, 0)),
        pl.BlockSpec((1, cout), lambda i: (0, 0)),
    ]
    args = [x2d, w_io, scale.reshape(1, cout), shift.reshape(1, cout)]

    if alpha is not None:
        kernel = _pw_bn_prelu_kernel
        in_specs.append(pl.BlockSpec((1, cout), lambda i: (0, 0)))
        args.append(jnp.broadcast_to(jnp.asarray(alpha).reshape(-1), (cout,)).reshape(1, cout))
    elif residual is not None:
        kernel = _pw_bn_res_kernel
        in_specs.append(pl.BlockSpec((tm, cout), lambda i: (i, 0)))
        args.append(residual)
    else:
        kernel = _pw_bn_kernel

    return pl.pallas_call(
        kernel,
        out_shape=jax.ShapeDtypeStruct((m, cout), x2d.dtype),
        grid=grid,
        in_specs=in_specs,
        out_specs=pl.BlockSpec((tm, cout), lambda i: (i, 0)),
        compiler_params=pltpu.CompilerParams(
            dimension_semantics=("parallel",),
            vmem_limit_bytes=_VMEM_LIMIT),
    )(*args)


# --------------------------- depthwise 3x3 kernel ---------------------------

def _dw3x3_bn_prelu_kernel(x_ref, w_ref, scale_ref, shift_ref, alpha_ref, o_ref, *,
                           dilation: int):
    # x_ref: (1, H_pad, W_pad, C) padded input, NHWC (channels on lanes)
    x = x_ref[...][0].astype(jnp.float32)
    w9 = w_ref[...].astype(jnp.float32)                 # (9, C), row k = tap (kh, kw)
    h_out, w_out, c = o_ref.shape[1], o_ref.shape[2], o_ref.shape[3]

    acc = jnp.zeros((h_out, w_out, c), jnp.float32)
    for kh in range(3):
        for kw in range(3):
            oh, ow = kh * dilation, kw * dilation
            tap = x[oh:oh + h_out, ow:ow + w_out, :]
            acc = acc + tap * w9[kh * 3 + kw]            # per-channel MAC on the VPU

    y = acc * scale_ref[...] + shift_ref[...]            # (1, C) broadcasts over (H, W, C)
    y = jnp.where(y >= 0.0, y, alpha_ref[...] * y)
    o_ref[...] = y[None].astype(o_ref.dtype)


def _dw_conv3x3_bn_prelu(h_padded_nhwc, w9, scale, shift, alpha, dilation):
    # TODO(synk): for very large feature maps, tile over H with halos instead of a
    # full per-batch image block to bound VMEM on v7x.
    n, hp, wp, c = h_padded_nhwc.shape
    ho, wo = hp - 2 * dilation, wp - 2 * dilation
    kernel = functools.partial(_dw3x3_bn_prelu_kernel, dilation=dilation)
    alpha_c = jnp.broadcast_to(jnp.asarray(alpha).reshape(-1), (c,)).reshape(1, c)
    return pl.pallas_call(
        kernel,
        out_shape=jax.ShapeDtypeStruct((n, ho, wo, c), h_padded_nhwc.dtype),
        grid=(n,),
        in_specs=[
            pl.BlockSpec((1, hp, wp, c), lambda i: (i, 0, 0, 0)),
            pl.BlockSpec((9, c), lambda i: (0, 0)),
            pl.BlockSpec((1, c), lambda i: (0, 0)),
            pl.BlockSpec((1, c), lambda i: (0, 0)),
            pl.BlockSpec((1, c), lambda i: (0, 0)),
        ],
        out_specs=pl.BlockSpec((1, ho, wo, c), lambda i: (i, 0, 0, 0)),
        compiler_params=pltpu.CompilerParams(
            dimension_semantics=("parallel",),
            vmem_limit_bytes=_VMEM_LIMIT),
    )(h_padded_nhwc, w9, scale.reshape(1, c), shift.reshape(1, c), alpha_c)


# --------------------------- full forward ---------------------------

def inverted_residual_forward(x, params, *, stride=1, dilation=1, skip_connection=True):
    n, cin, h, w = x.shape
    hidden = params["w1"].shape[0]
    cout = params["w3"].shape[0]
    use_res = (stride == 1) and (cin == cout) and skip_connection

    # stage 1: 1x1 expand conv + BN + PReLU  (channel matmul)
    x2d = jnp.transpose(x, (0, 2, 3, 1)).reshape(n * h * w, cin)
    s1, t1 = _fold_bn(params["bn1_gamma"], params["bn1_beta"],
                      params["bn1_mean"], params["bn1_var"], params["b1"])
    h2d = _pw_conv_bn(x2d, params["w1"].T, s1, t1, alpha=params["alpha1"])

    # stage 2: 3x3 depthwise conv + BN + PReLU (NHWC, channels on lanes)
    s2, t2 = _fold_bn(params["bn2_gamma"], params["bn2_beta"],
                      params["bn2_mean"], params["bn2_var"], params["b_dw"])
    pad = dilation
    h_p = jnp.pad(h2d.reshape(n, h, w, hidden),
                  ((0, 0), (pad, pad), (pad, pad), (0, 0)))
    w9 = jnp.transpose(params["w_dw"][:, 0], (1, 2, 0)).reshape(9, hidden)
    d = _dw_conv3x3_bn_prelu(h_p, w9, s2, t2, params["alpha2"], dilation)
    if stride == 2:
        # TODO(synk): fold the stride-2 subsample into the depthwise kernel
        # (strided sublane slice) instead of post-hoc slicing.
        d = d[:, ::2, ::2, :]
    ho, wo = d.shape[1], d.shape[2]

    # stage 3: 1x1 project conv + BN (+ fused residual add)
    s3, t3 = _fold_bn(params["bn3_gamma"], params["bn3_beta"],
                      params["bn3_mean"], params["bn3_var"], params["b3"])
    o2d = _pw_conv_bn(d.reshape(n * ho * wo, hidden), params["w3"].T, s3, t3,
                      residual=(x2d if use_res else None))
    return jnp.transpose(o2d.reshape(n, ho, wo, cout), (0, 3, 1, 2))


# --------------------------- pure-JAX reference ---------------------------

def _ref_inverted_residual(x, p, *, stride, dilation, skip_connection, eps=1e-5):
    n, cin, h, w = x.shape
    hidden = p["w1"].shape[0]
    cout = p["w3"].shape[0]
    use_res = (stride == 1) and (cin == cout) and skip_connection
    hi = jax.lax.Precision.HIGHEST

    def bn(y, g, b, m, v):
        inv = (g / jnp.sqrt(v + eps))[None, :, None, None]
        return (y - m[None, :, None, None]) * inv + b[None, :, None, None]

    def prelu(y, a):
        return jnp.where(y >= 0, y, a * y)

    y = jnp.einsum("nchw,oc->nohw", x, p["w1"], precision=hi) + p["b1"][None, :, None, None]
    y = prelu(bn(y, p["bn1_gamma"], p["bn1_beta"], p["bn1_mean"], p["bn1_var"]), p["alpha1"])

    y = jax.lax.conv_general_dilated(
        y, p["w_dw"], window_strides=(stride, stride),
        padding=((dilation, dilation), (dilation, dilation)),
        rhs_dilation=(dilation, dilation), feature_group_count=hidden,
        dimension_numbers=("NCHW", "OIHW", "NCHW"),
        precision=hi) + p["b_dw"][None, :, None, None]
    y = prelu(bn(y, p["bn2_gamma"], p["bn2_beta"], p["bn2_mean"], p["bn2_var"]), p["alpha2"])

    y = jnp.einsum("nchw,oc->nohw", y, p["w3"], precision=hi) + p["b3"][None, :, None, None]
    y = bn(y, p["bn3_gamma"], p["bn3_beta"], p["bn3_mean"], p["bn3_var"])
    if use_res:
        y = y + x
    return y


if __name__ == "__main__":
    key = jax.random.PRNGKey(0)
    n, cin, h, w = 2, 16, 16, 16
    expand_ratio = 2.0
    cout = 16
    hidden = _make_divisible(int(round(cin * expand_ratio)), 8)   # 32

    ks = jax.random.split(key, 20)

    def nrm(k, shape, s=0.1):
        return (s * jax.random.normal(k, shape)).astype(jnp.float32)

    params = {
        "w1": nrm(ks[0], (hidden, cin)),
        "b1": nrm(ks[1], (hidden,)),
        "bn1_gamma": 1.0 + nrm(ks[2], (hidden,)),
        "bn1_beta": nrm(ks[3], (hidden,)),
        "bn1_mean": nrm(ks[4], (hidden,)),
        "bn1_var": 1.0 + jnp.abs(nrm(ks[5], (hidden,))),
        "alpha1": jnp.full((1,), 0.25, jnp.float32),       # nn.PReLU() default
        "w_dw": nrm(ks[6], (hidden, 1, 3, 3)),
        "b_dw": nrm(ks[7], (hidden,)),
        "bn2_gamma": 1.0 + nrm(ks[8], (hidden,)),
        "bn2_beta": nrm(ks[9], (hidden,)),
        "bn2_mean": nrm(ks[10], (hidden,)),
        "bn2_var": 1.0 + jnp.abs(nrm(ks[11], (hidden,))),
        "alpha2": jnp.full((1,), 0.25, jnp.float32),
        "w3": nrm(ks[12], (cout, hidden)),
        "b3": nrm(ks[13], (cout,)),
        "bn3_gamma": 1.0 + nrm(ks[14], (cout,)),
        "bn3_beta": nrm(ks[15], (cout,)),
        "bn3_mean": nrm(ks[16], (cout,)),
        "bn3_var": 1.0 + jnp.abs(nrm(ks[17], (cout,))),
    }
    x = jax.random.normal(ks[18], (n, cin, h, w), dtype=jnp.float32)

    # stride=1: residual connection active (in == out)
    out = jax.block_until_ready(
        inverted_residual_forward(x, params, stride=1, dilation=1, skip_connection=True))
    ref = _ref_inverted_residual(x, params, stride=1, dilation=1, skip_connection=True)
    assert out.shape == (n, cout, h, w)
    assert jnp.allclose(out, ref, atol=1e-3, rtol=1e-3), float(jnp.max(jnp.abs(out - ref)))

    # stride=2: no residual connection
    out2 = jax.block_until_ready(
        inverted_residual_forward(x, params, stride=2, dilation=1, skip_connection=True))
    ref2 = _ref_inverted_residual(x, params, stride=2, dilation=1, skip_connection=True)
    assert out2.shape == ref2.shape == (n, cout, h // 2, w // 2)
    assert jnp.allclose(out2, ref2, atol=1e-3, rtol=1e-3), float(jnp.max(jnp.abs(out2 - ref2)))

    print("KERNEL_OK")
</pallas_src>

<mosaic_0001>
module attributes {stable_mosaic.version = 11 : i64} {
  func.func @_pw_bn_prelu_kernel(%arg0: i32, %arg1: memref<256x16xf32, #tpu.memory_space<vmem>>, %arg2: memref<16x32xf32, #tpu.memory_space<vmem>>, %arg3: memref<1x32xf32, #tpu.memory_space<vmem>>, %arg4: memref<1x32xf32, #tpu.memory_space<vmem>>, %arg5: memref<1x32xf32, #tpu.memory_space<vmem>>, %arg6: memref<256x32xf32, #tpu.memory_space<vmem>>) attributes {dimension_semantics = [#tpu.dimension_semantics<parallel>], iteration_bounds = array<i64: 2>, scalar_prefetch = 0 : i64, scratch_operands = 0 : i64, tpu.core_type = #tpu.core_type<tc>, window_params = [{transform_indices = @transform_0, window_bounds = array<i64: 256, 16>}, {pipeline_mode = #tpu.pipeline_mode<synchronous>, transform_indices = @transform_1, window_bounds = array<i64: 16, 32>}, {pipeline_mode = #tpu.pipeline_mode<synchronous>, transform_indices = @transform_2, window_bounds = array<i64: 1, 32>}, {pipeline_mode = #tpu.pipeline_mode<synchronous>, transform_indices = @transform_3, window_bounds = array<i64: 1, 32>}, {pipeline_mode = #tpu.pipeline_mode<synchronous>, transform_indices = @transform_4, window_bounds = array<i64: 1, 32>}, {transform_indices = @transform_5, window_bounds = array<i64: 256, 32>}]} {
    %c0 = arith.constant 0 : index
    %c0_0 = arith.constant 0 : index
    %0 = vector.load %arg1[%c0, %c0_0] : memref<256x16xf32, #tpu.memory_space<vmem>>, vector<256x16xf32>
    %c0_1 = arith.constant 0 : index
    %c0_2 = arith.constant 0 : index
    %1 = vector.load %arg2[%c0_1, %c0_2] : memref<16x32xf32, #tpu.memory_space<vmem>>, vector<16x32xf32>
    %cst = arith.constant dense<0.000000e+00> : vector<256x32xf32>
    %2 = tpu.matmul %0, %1, %cst {dimension_numbers = #tpu.dot_dimension_numbers<[1], [0], [0], [1], [0, 0, 1, 1], [], []>} : vector<256x16xf32>, vector<16x32xf32>, vector<256x32xf32> -> vector<256x32xf32>
    %c0_3 = arith.constant 0 : index
    %c0_4 = arith.constant 0 : index
    %3 = vector.load %arg3[%c0_3, %c0_4] : memref<1x32xf32, #tpu.memory_space<vmem>>, vector<1x32xf32>
    %4 = vector.broadcast %3 : vector<1x32xf32> to vector<256x32xf32>
    %5 = arith.mulf %2, %4 : vector<256x32xf32>
    %c0_5 = arith.constant 0 : index
    %c0_6 = arith.constant 0 : index
    %6 = vector.load %arg4[%c0_5, %c0_6] : memref<1x32xf32, #tpu.memory_space<vmem>>, vector<1x32xf32>
    %7 = vector.broadcast %6 : vector<1x32xf32> to vector<256x32xf32>
    %8 = arith.addf %5, %7 : vector<256x32xf32>
    %cst_7 = arith.constant 0.000000e+00 : f32
    %9 = vector.broadcast %cst_7 : f32 to vector<256x32xf32>
    %10 = arith.cmpf oge, %8, %9 : vector<256x32xf32>
    %c0_8 = arith.constant 0 : index
    %c0_9 = arith.constant 0 : index
    %11 = vector.load %arg5[%c0_8, %c0_9] : memref<1x32xf32, #tpu.memory_space<vmem>>, vector<1x32xf32>
    %12 = vector.broadcast %11 : vector<1x32xf32> to vector<256x32xf32>
    %13 = arith.mulf %12, %8 : vector<256x32xf32>
    %14 = arith.select %10, %8, %13 : vector<256x32xi1>, vector<256x32xf32>
    %c0_10 = arith.constant 0 : index
    %c0_11 = arith.constant 0 : index
    %15 = vector.load %arg6[%c0_10, %c0_11] : memref<256x32xf32, #tpu.memory_space<vmem>>, vector<256x32xf32>
    tpu.vector_store %arg6[%c0_10, %c0_11], %14 {strides = array<i32>} : memref<256x32xf32, #tpu.memory_space<vmem>>, vector<256x32xf32>,
    return
  }
  func.func @transform_0(%arg0: i32) -> (i32, i32) {
    %c0_i32 = arith.constant 0 : i32
    %c0_i32_0 = arith.constant 0 : i32
    return %arg0, %c0_i32 : i32, i32
  }
  func.func @transform_1(%arg0: i32) -> (i32, i32) {
    %c0_i32 = arith.constant 0 : i32
    %c0_i32_0 = arith.constant 0 : i32
    %c0_i32_1 = arith.constant 0 : i32
    return %c0_i32, %c0_i32_0 : i32, i32
  }
  func.func @transform_2(%arg0: i32) -> (i32, i32) {
    %c0_i32 = arith.constant 0 : i32
    %c0_i32_0 = arith.constant 0 : i32
    %c0_i32_1 = arith.constant 0 : i32
    return %c0_i32, %c0_i32_0 : i32, i32
  }
  func.func @transform_3(%arg0: i32) -> (i32, i32) {
    %c0_i32 = arith.constant 0 : i32
    %c0_i32_0 = arith.constant 0 : i32
    %c0_i32_1 = arith.constant 0 : i32
    return %c0_i32, %c0_i32_0 : i32, i32
  }
  func.func @transform_4(%arg0: i32) -> (i32, i32) {
    %c0_i32 = arith.constant 0 : i32
    %c0_i32_0 = arith.constant 0 : i32
    %c0_i32_1 = arith.constant 0 : i32
    return %c0_i32, %c0_i32_0 : i32, i32
  }
  func.func @transform_5(%arg0: i32) -> (i32, i32) {
    %c0_i32 = arith.constant 0 : i32
    %c0_i32_0 = arith.constant 0 : i32
    return %arg0, %c0_i32 : i32, i32
  }
}

</mosaic_0001>

<llo_original>
// kernel: tpu_custom_call.1
$region0: #{tpu_custom_call.1}
  #allocation0 [shape = 'u32[]', space=smem, size = 0x4, offset = 0x4, fixed_abs, tag = 'smem constant byte address 0x4 - core index']
  #allocation1 [shape = 'u32[144,128]{1,0:T(1,128)}', space=vmem, size = 0x12000, scoped, tag = 'internal scratch']
  %s0 = inlined_call_operand.vmem [shape: f32[512,16], index: 0, kind: input, shape index: {}]
  %s1 = inlined_call_operand.vmem [shape: f32[16,32], index: 1, kind: input, shape index: {}]
  %s2 = inlined_call_operand.vmem [shape: f32[1,32], index: 2, kind: input, shape index: {}]
  %s3 = inlined_call_operand.vmem [shape: f32[1,32], index: 3, kind: input, shape index: {}]
  %s4 = inlined_call_operand.vmem [shape: f32[1,32], index: 4, kind: input, shape index: {}]
  %s5 = inlined_call_operand.vmem [shape: f32[512,32], index: 5, kind: output, shape index: {}]
  %s6 = sld [smem:[#allocation0]]
  $region53: #{tpu_custom_call.1} parent=0
    _
  %s8 = ssub.s32 1, %s6
  %s9 = scalar_select 0, %s8, %s6
  loop: start=0, step=1, limit=4
  $region2: #{tpu_custom_call.1} parent=0 // loop_pre_header
    _
  $region3: #{tpu_custom_call.1} parent=0 // loop_header
    %s11 = sphi 0, %s15
    %p12 = scmp.ge.s32.totalorder %s11, 4
    %s21 = sphi 0, %s23
    %s24 = sphi 0, %s21
    %s25 = sphi 0, %s24
    %s41 = sphi 0, %s25
    %s45 = sphi 0, %s45
    %s47 = sphi 0, %s45
    %s48 = sphi 0, %s47
    %s62 = sphi 0, %s48
    %s66 = sphi 0, %s66
    %s68 = sphi 0, %s66
    %s69 = sphi 0, %s68
    %s83 = sphi 0, %s69
    %s87 = sphi 0, %s87
    %s89 = sphi 0, %s87
    %s90 = sphi 0, %s89
    %s104 = sphi 0, %s90
    %s108 = sphi 0, %s108
    %s110 = sphi 0, %s108
    %s111 = sphi 0, %s110
    %s125 = sphi 0, %s111
    %s131 = sphi 0, %s133
    %s134 = sphi 0, %s131
    %s135 = sphi 0, %s134
    %s151 = sphi 0, %s135
  $region4: #{tpu_custom_call.1} parent=0 // loop_header_branch
    %14 = sbr.rel (%p12) target = $region8
  $region5: #{tpu_custom_call.1} parent=0 // loop_body
    %s16 = ssub.s32 %s11, 1
    %s17 = ssub.s32 %s11, 2
    %s18 = sadd.s32 %s11, 1
    %s19 = ssub.s32 %s11, %s18
    %p20 = scmp.eq.s32.totalorder %s19, 0
    %s22 = sadd.s32 %s21, 1
    %s23 = scalar_select %p20, %s21, %s22
    %p26 = pneg %p20
    %p27 = scmp.eq.s32.totalorder %s11, 1
    %p28 = por %p26, %p27
    %p29 = scmp.ne.s32.totalorder %s21, %s24
    %p30 = scmp.eq.s32.totalorder %s11, 0
    %p31 = por %p29, %p30
    %p32 = scmp.ne.s32.totalorder %s21, %s24
    %p33 = scmp.eq.s32.totalorder %s16, 1
    %p34 = por %p32, %p33
    %p35 = scmp.ne.s32.totalorder %s24, %s25
    %p36 = scmp.eq.s32.totalorder %s16, 0
    %p37 = por %p35, %p36
    %p38 = scmp.ne.s32.totalorder %s24, %s25
    %p39 = scmp.eq.s32.totalorder %s17, 1
    %p40 = por %p38, %p39
    %p42 = scmp.ne.s32.totalorder %s25, %s41
    %p43 = scmp.eq.s32.totalorder %s17, 0
    %p44 = por %p42, %p43
    %s46 = sadd.s32 %s45, 1
    %p49 = scmp.eq.s32.totalorder %s11, 1
    %p50 = scmp.ne.s32.totalorder %s45, %s47
    %p51 = scmp.eq.s32.totalorder %s11, 0
    %p52 = por %p50, %p51
    %p53 = scmp.ne.s32.totalorder %s45, %s47
    %p54 = scmp.eq.s32.totalorder %s16, 1
    %p55 = por %p53, %p54
    %p56 = scmp.ne.s32.totalorder %s47, %s48
    %p57 = scmp.eq.s32.totalorder %s16, 0
    %p58 = por %p56, %p57
    %p59 = scmp.ne.s32.totalorder %s47, %s48
    %p60 = scmp.eq.s32.totalorder %s17, 1
    %p61 = por %p59, %p60
    %p63 = scmp.ne.s32.totalorder %s48, %s62
    %p64 = scmp.eq.s32.totalorder %s17, 0
    %p65 = por %p63, %p64
    %s67 = sadd.s32 %s66, 1
    %p70 = scmp.eq.s32.totalorder %s11, 1
    %p71 = scmp.ne.s32.totalorder %s66, %s68
    %p72 = scmp.eq.s32.totalorder %s11, 0
    %p73 = por %p71, %p72
    %p74 = scmp.ne.s32.totalorder %s66, %s68
    %p75 = scmp.eq.s32.totalorder %s16, 1
    %p76 = por %p74, %p75
    %p77 = scmp.ne.s32.totalorder %s68, %s69
    %p78 = scmp.eq.s32.totalorder %s16, 0
    %p79 = por %p77, %p78
    %p80 = scmp.ne.s32.totalorder %s68, %s69
    %p81 = scmp.eq.s32.totalorder %s17, 1
    %p82 = por %p80, %p81
    %p84 = scmp.ne.s32.totalorder %s69, %s83
    %p85 = scmp.eq.s32.totalorder %s17, 0
    %p86 = por %p84, %p85
    %s88 = sadd.s32 %s87, 1
    %p91 = scmp.eq.s32.totalorder %s11, 1
    %p92 = scmp.ne.s32.totalorder %s87, %s89
    %p93 = scmp.eq.s32.totalorder %s11, 0
    %p94 = por %p92, %p93
    %p95 = scmp.ne.s32.totalorder %s87, %s89
    %p96 = scmp.eq.s32.totalorder %s16, 1
    %p97 = por %p95, %p96
    %p98 = scmp.ne.s32.totalorder %s89, %s90
    %p99 = scmp.eq.s32.totalorder %s16, 0
    %p100 = por %p98, %p99
    %p101 = scmp.ne.s32.totalorder %s89, %s90
    %p102 = scmp.eq.s32.totalorder %s17, 1
    %p103 = por %p101, %p102
    %p105 = scmp.ne.s32.totalorder %s90, %s104
    %p106 = scmp.eq.s32.totalorder %s17, 0
    %p107 = por %p105, %p106
    %s109 = sadd.s32 %s108, 1
    %p112 = scmp.eq.s32.totalorder %s11, 1
    %p113 = scmp.ne.s32.totalorder %s108, %s110
    %p114 = scmp.eq.s32.totalorder %s11, 0
    %p115 = por %p113, %p114
    %p116 = scmp.ne.s32.totalorder %s108, %s110
    %p117 = scmp.eq.s32.totalorder %s16, 1
    %p118 = por %p116, %p117
    %p119 = scmp.ne.s32.totalorder %s110, %s111
    %p120 = scmp.eq.s32.totalorder %s16, 0
    %p121 = por %p119, %p120
    %p122 = scmp.ne.s32.totalorder %s110, %s111
    %p123 = scmp.eq.s32.totalorder %s17, 1
    %p124 = por %p122, %p123
    %p126 = scmp.ne.s32.totalorder %s111, %s125
    %p127 = scmp.eq.s32.totalorder %s17, 0
    %p128 = por %p126, %p127
    %s129 = ssub.s32 %s11, %s18
    %p130 = scmp.eq.s32.totalorder %s129, 0
    %s132 = sadd.s32 %s131, 1
    %s133 = scalar_select %p130, %s131, %s132
    %p136 = pneg %p130
    %p137 = scmp.eq.s32.totalorder %s11, 1
    %p138 = por %p136, %p137
    %p139 = scmp.ne.s32.totalorder %s131, %s134
    %p140 = scmp.eq.s32.totalorder %s11, 0
    %p141 = por %p139, %p140
    %p142 = scmp.ne.s32.totalorder %s131, %s134
    %p143 = scmp.eq.s32.totalorder %s16, 1
    %p144 = por %p142, %p143
    %p145 = scmp.ne.s32.totalorder %s134, %s135
    %p146 = scmp.eq.s32.totalorder %s16, 0
    %p147 = por %p145, %p146
    %p148 = scmp.ne.s32.totalorder %s134, %s135
    %p149 = scmp.eq.s32.totalorder %s17, 1
    %p150 = por %p148, %p149
    %p152 = scmp.ne.s32.totalorder %s135, %s151
    %p153 = scmp.eq.s32.totalorder %s17, 0
    %p154 = por %p152, %p153
    %p155 = scmp.le.s32.totalorder 1, %s11
    %p156 = scmp.lt.s32.totalorder %s11, 3
    %p157 = pnand %p155, %p156
    %p158 = pneg %p157
    // Predicated region
    $region9: #{tpu_custom_call.1} parent=5 // pred_check
      _
    $region10: #{tpu_custom_call.1} parent=5 // pred_check_branch
      %160 = sbr.rel (%p157) target = $region12
    $region11: #{tpu_custom_call.1} parent=5 // pred_region
      %s161 = ssub.s32 %s11, 1
      // Predicated region
      $region13: #{tpu_custom_call.1} parent=11 // pred_check
        %p162 = pneg %p58
      $region14: #{tpu_custom_call.1} parent=11 // pred_check_branch
        %164 = sbr.rel (%p162) target = $region16
      $region15: #{tpu_custom_call.1} parent=11 // pred_region
        _
      $region16: #{tpu_custom_call.1} parent=11 // pred_fallthru
        _
      // Predicated region
      $region17: #{tpu_custom_call.1} parent=11 // pred_check
        %p165 = pneg %p79
      $region18: #{tpu_custom_call.1} parent=11 // pred_check_branch
        %167 = sbr.rel (%p165) target = $region20
      $region19: #{tpu_custom_call.1} parent=11 // pred_region
        _
      $region20: #{tpu_custom_call.1} parent=11 // pred_fallthru
        _
      // Predicated region
      $region21: #{tpu_custom_call.1} parent=11 // pred_check
        %p168 = pneg %p100
      $region22: #{tpu_custom_call.1} parent=11 // pred_check_branch
        %170 = sbr.rel (%p168) target = $region24
      $region23: #{tpu_custom_call.1} parent=11 // pred_region
        _
      $region24: #{tpu_custom_call.1} parent=11 // pred_fallthru
        _
      // Predicated region
      $region25: #{tpu_custom_call.1} parent=11 // pred_check
        %p171 = pneg %p121
      $region26: #{tpu_custom_call.1} parent=11 // pred_check_branch
        %173 = sbr.rel (%p171) target = $region28
      $region27: #{tpu_custom_call.1} parent=11 // pred_region
        _
      $region28: #{tpu_custom_call.1} parent=11 // pred_fallthru
        _
    $region12: #{tpu_custom_call.1} parent=5 // pred_fallthru
      _
    %p174 = scmp.lt.s32.totalorder %s11, 2
    // Predicated region
    $region29: #{tpu_custom_call.1} parent=5 // pred_check
      %p175 = pneg %p174
    $region30: #{tpu_custom_call.1} parent=5 // pred_check_branch
      %177 = sbr.rel (%p175) target = $region32
    $region31: #{tpu_custom_call.1} parent=5 // pred_region
      // Predicated region
      $region33: #{tpu_custom_call.1} parent=31 // pred_check
        %p178 = pneg %p31
      $region34: #{tpu_custom_call.1} parent=31 // pred_check_branch
        %180 = sbr.rel (%p178) target = $region36
      $region35: #{tpu_custom_call.1} parent=31 // pred_region
        %s181 = smul.u32 32, %s11
        %p182 = scmp.lt.s32.totalorder %s181, 63
        %s183 = scalar_select %p182, %s181, 63
        %s184 = smul.addr %s183, 8
        %s185 = scalar_lea.vmem %s0, %s184
        %s186 = smul.u32 32, %s11
      $region36: #{tpu_custom_call.1} parent=31 // pred_fallthru
        _
    $region32: #{tpu_custom_call.1} parent=5 // pred_fallthru
      _
    %p187 = scmp.le.s32.totalorder 1, %s11
    %p188 = scmp.lt.s32.totalorder %s11, 3
    %p189 = pnand %p187, %p188
    %p190 = pneg %p189
    // Predicated region
    $region37: #{tpu_custom_call.1} parent=5 // pred_check
      _
    $region38: #{tpu_custom_call.1} parent=5 // pred_check_branch
      %192 = sbr.rel (%p189) target = $region40
    $region39: #{tpu_custom_call.1} parent=5 // pred_region
      %s193 = ssub.s32 %s11, 1
      %s194 = smul.u32 32, %s16
      %p195 = scmp.lt.s32.totalorder %s194, 63
      %s196 = scalar_select %p195, %s194, 63
      %s197 = smul.addr %s196, 8
      %s198 = scalar_lea.vmem %s0, %s197
      %p199 = pneg %p37
      %p200 = pneg %p34
      %p201 = pneg %p58
      %p202 = pneg %p55
      %p203 = pneg %p79
      %p204 = pneg %p76
      %p205 = pneg %p100
      %p206 = pneg %p97
      %p207 = pneg %p121
      %p208 = pneg %p118
      %p209 = pneg %p147
      %p210 = pneg %p144
      %s211 = smul.u32 32, %s16
      %p212 = scmp.lt.s32.totalorder %s211, 63
      %s213 = scalar_select %p212, %s211, 63
      %s214 = smul.addr %s213, 8
      %s215 = scalar_lea.vmem %s5, %s214
      %s216 = smul.u32 32, %s16
      %p217 = scmp.lt.s32.totalorder %s216, 63
      %s218 = scalar_select %p217, %s216, 63
      %s219 = smul.addr %s218, 8
      %s220 = scalar_lea.vmem %s0, %s219
      %s221 = smul.u32 32, %s16
      %s222 = smul.u32 32, %s16
      %p223 = scmp.lt.s32.totalorder %s222, 63
      %s224 = scalar_select %p223, %s222, 63
      %s225 = smul.addr %s224, 8
      %s226 = scalar_lea.vmem %s5, %s225
      %s227 = smul.u32 32, %s16
      %v228 = vld [vmem:[%s220] sm:$0xff]
      %v229 = vld [vmem:[%s220 + $0x8] sm:$0xff]
      %v230 = vld [vmem:[%s220 + $0x10] sm:$0xff]
      %v231 = vld [vmem:[%s220 + $0x18] sm:$0xff]
      %v232 = vld [vmem:[%s220 + $0x20] sm:$0xff]
      %v233 = vld [vmem:[%s220 + $0x28] sm:$0xff]
      %v234 = vld [vmem:[%s220 + $0x30] sm:$0xff]
      %v235 = vld [vmem:[%s220 + $0x38] sm:$0xff]
      %v236 = vld [vmem:[%s220 + $0x40] sm:$0xff]
      %v237 = vld [vmem:[%s220 + $0x48] sm:$0xff]
      %v238 = vld [vmem:[%s220 + $0x50] sm:$0xff]
      %v239 = vld [vmem:[%s220 + $0x58] sm:$0xff]
      %v240 = vld [vmem:[%s220 + $0x60] sm:$0xff]
      %v241 = vld [vmem:[%s220 + $0x68] sm:$0xff]
      %v242 = vld [vmem:[%s220 + $0x70] sm:$0xff]
      %v243 = vld [vmem:[%s220 + $0x78] sm:$0xff]
      %v244 = vld [vmem:[%s220 + $0x80] sm:$0xff]
      %v245 = vld [vmem:[%s220 + $0x88] sm:$0xff]
      %v246 = vld [vmem:[%s220 + $0x90] sm:$0xff]
      %v247 = vld [vmem:[%s220 + $0x98] sm:$0xff]
      %v248 = vld [vmem:[%s220 + $0xa0] sm:$0xff]
      %v249 = vld [vmem:[%s220 + $0xa8] sm:$0xff]
      %v250 = vld [vmem:[%s220 + $0xb0] sm:$0xff]
      %v251 = vld [vmem:[%s220 + $0xb8] sm:$0xff]
      %v252 = vld [vmem:[%s220 + $0xc0] sm:$0xff]
      %v253 = vld [vmem:[%s220 + $0xc8] sm:$0xff]
      %v254 = vld [vmem:[%s220 + $0xd0] sm:$0xff]
      %v255 = vld [vmem:[%s220 + $0xd8] sm:$0xff]
      %v256 = vld [vmem:[%s220 + $0xe0] sm:$0xff]
      %v257 = vld [vmem:[%s220 + $0xe8] sm:$0xff]
      %v258 = vld [vmem:[%s220 + $0xf0] sm:$0xff]
      %v259 = vld [vmem:[%s220 + $0xf8] sm:$0xff]
      %v260 = vld [vmem:[%s1] sm:$0xff]
      %v261 = vld [vmem:[%s1 + $0x8] sm:$0xff]
      %vm262 = vcmask 130048
      %v264 = vsel %vm262, %v228, 0
      %v267 = vsel %vm262, %v229, 0
      %v270 = vsel %vm262, %v230, 0
      %v273 = vsel %vm262, %v231, 0
      %v276 = vsel %vm262, %v232, 0
      %v279 = vsel %vm262, %v233, 0
      %v282 = vsel %vm262, %v234, 0
      %v285 = vsel %vm262, %v235, 0
      %v288 = vsel %vm262, %v236, 0
      %v291 = vsel %vm262, %v237, 0
      %v294 = vsel %vm262, %v238, 0
      %v297 = vsel %vm262, %v239, 0
      %v300 = vsel %vm262, %v240, 0
      %v303 = vsel %vm262, %v241, 0
      %v306 = vsel %vm262, %v242, 0
      %v309 = vsel %vm262, %v243, 0
      %v312 = vsel %vm262, %v244, 0
      %v315 = vsel %vm262, %v245, 0
      %v318 = vsel %vm262, %v246, 0
      %v321 = vsel %vm262, %v247, 0
      %v324 = vsel %vm262, %v248, 0
      %v327 = vsel %vm262, %v249, 0
      %v330 = vsel %vm262, %v250, 0
      %v333 = vsel %vm262, %v251, 0
      %v336 = vsel %vm262, %v252, 0
      %v339 = vsel %vm262, %v253, 0
      %v342 = vsel %vm262, %v254, 0
      %v345 = vsel %vm262, %v255, 0
      %v348 = vsel %vm262, %v256, 0
      %v351 = vsel %vm262, %v257, 0
      %v354 = vsel %vm262, %v258, 0
      %v357 = vsel %vm262, %v259, 0
      %359 = vmatprep.subr.mxu0 0.0
      %360 = vmatpush1.msra.mxu0 %v260
      %361 = vmatprep.subr.mxu0 0.0
      %362 = vmatpush1.msra.mxu0 %v261
      %363 = vmatprep.subr.mxu0 0.0
      %364 = vmatpush1.msra.mxu0 0.0
      %365 = vmatprep.subr.mxu0 0.0
      %366 = vmatpush1.msra.mxu0 0.0
      %367 = vmatprep.subr.mxu0 0.0
      %368 = vmatpush1.msra.mxu0 0.0
      %369 = vmatprep.subr.mxu0 0.0
      %370 = vmatpush1.msra.mxu0 0.0
      %371 = vmatprep.subr.mxu0 0.0
      %372 = vmatpush1.msra.mxu0 0.0
      %373 = vmatprep.subr.mxu0 0.0
      %374 = vmatpush1.msra.mxu0 0.0
      %375 = vmatprep.subr.mxu0 0.0
      %376 = vmatpush1.msra.mxu0 0.0
      %377 = vmatprep.subr.mxu0 0.0
      %378 = vmatpush1.msra.mxu0 0.0
      %379 = vmatprep.subr.mxu0 0.0
      %380 = vmatpush1.msra.mxu0 0.0
      %381 = vmatprep.subr.mxu0 0.0
      %382 = vmatpush1.msra.mxu0 0.0
      %383 = vmatprep.subr.mxu0 0.0
      %384 = vmatpush1.msra.mxu0 0.0
      %385 = vmatprep.subr.mxu0 0.0
      %386 = vmatpush1.msra.mxu0 0.0
      %387 = vmatprep.subr.mxu0 0.0
      %388 = vmatpush1.msra.mxu0 0.0
      %389 = vmatprep.subr.mxu0 0.0
      %390 = vmatpush1.msra.mxu0 0.0
      %391 = vmatprep.subr.mxu0 0.0
      %392 = vmatpush1.msra.mxu0 0.0
      %393 = vmatprep.subr.mxu0 0.0
      %394 = vmatpush1.msra.mxu0 0.0
      %395 = vmatprep.subr.mxu0 0.0
      %396 = vmatpush1.msra.mxu0 0.0
      %397 = vmatprep.subr.mxu0 0.0
      %398 = vmatpush1.msra.mxu0 0.0
      %399 = vmatprep.subr.mxu0 0.0
      %400 = vmatpush1.msra.mxu0 0.0
      %401 = vmatprep.subr.mxu0 0.0
      %402 = vmatpush1.msra.mxu0 0.0
      %403 = vmatprep.subr.mxu0 0.0
      %404 = vmatpush1.msra.mxu0 0.0
      %405 = vmatprep.subr.mxu0 0.0
      %406 = vmatpush1.msra.mxu0 0.0
      %407 = vmatprep.subr.mxu0 0.0
      %408 = vmatpush1.msra.mxu0 0.0
      %409 = vmatprep.subr.mxu0 0.0
      %410 = vmatpush1.msra.mxu0 0.0
      %411 = vmatprep.subr.mxu0 0.0
      %412 = vmatpush1.msra.mxu0 0.0
      %413 = vmatprep.subr.mxu0 0.0
      %414 = vmatpush1.msra.mxu0 0.0
      %415 = vmatprep.subr.mxu0 0.0
      %416 = vmatpush1.msra.mxu0 0.0
      %417 = vmatprep.subr.mxu0 0.0
      %418 = vmatpush1.msra.mxu0 0.0
      %419 = vmatprep.subr.mxu0 0.0
      %420 = vmatpush1.msra.mxu0 0.0
      %421 = vmatprep.subr.mxu0 0.0
      %422 = vmatpush1.msra.mxu0 0.0
      %423 = vmatprep.mubr.f32.mxu0 0.0
      %424 = vmatmul.mubr.f32.gmra.mrb[0].mxu0 %v264
      %v425 = vpop.f32.mrb[0].mxu0
      %v426 = vadd.f32 0.0, %v425
      %v427 = vpop.f32.mrb[0].mxu0
      %428 = vmatprep.mubr.f32.mxu0 0.0
      %429 = vmatmul.mubr.f32.gmra.mrb[0].mxu0 %v267
      %v430 = vpop.f32.mrb[0].mxu0
      %v431 = vadd.f32 0.0, %v430
      %v432 = vpop.f32.mrb[0].mxu0
      %433 = vmatprep.mubr.f32.mxu0 0.0
      %434 = vmatmul.mubr.f32.gmra.mrb[0].mxu0 %v270
      %v435 = vpop.f32.mrb[0].mxu0
      %v436 = vadd.f32 0.0, %v435
      %v437 = vpop.f32.mrb[0].mxu0
      %438 = vmatprep.mubr.f32.mxu0 0.0
      %439 = vmatmul.mubr.f32.gmra.mrb[0].mxu0 %v273
      %v440 = vpop.f32.mrb[0].mxu0
      %v441 = vadd.f32 0.0, %v440
      %v442 = vpop.f32.mrb[0].mxu0
      %443 = vmatprep.mubr.f32.mxu0 0.0
      %444 = vmatmul.mubr.f32.gmra.mrb[0].mxu0 %v276
      %v445 = vpop.f32.mrb[0].mxu0
      %v446 = vadd.f32 0.0, %v445
      %v447 = vpop.f32.mrb[0].mxu0
      %448 = vmatprep.mubr.f32.mxu0 0.0
      %449 = vmatmul.mubr.f32.gmra.mrb[0].mxu0 %v279
      %v450 = vpop.f32.mrb[0].mxu0
      %v451 = vadd.f32 0.0, %v450
      %v452 = vpop.f32.mrb[0].mxu0
      %453 = vmatprep.mubr.f32.mxu0 0.0
      %454 = vmatmul.mubr.f32.gmra.mrb[0].mxu0 %v282
      %v455 = vpop.f32.mrb[0].mxu0
      %v456 = vadd.f32 0.0, %v455
      %v457 = vpop.f32.mrb[0].mxu0
      %458 = vmatprep.mubr.f32.mxu0 0.0
      %459 = vmatmul.mubr.f32.gmra.mrb[0].mxu0 %v285
      %v460 = vpop.f32.mrb[0].mxu0
      %v461 = vadd.f32 0.0, %v460
      %v462 = vpop.f32.mrb[0].mxu0
      %463 = vmatprep.mubr.f32.mxu0 0.0
      %464 = vmatmul.mubr.f32.gmra.mrb[0].mxu0 %v288
      %v465 = vpop.f32.mrb[0].mxu0
      %v466 = vadd.f32 0.0, %v465
      %v467 = vpop.f32.mrb[0].mxu0
      %468 = vmatprep.mubr.f32.mxu0 0.0
      %469 = vmatmul.mubr.f32.gmra.mrb[0].mxu0 %v291
      %v470 = vpop.f32.mrb[0].mxu0
      %v471 = vadd.f32 0.0, %v470
      %v472 = vpop.f32.mrb[0].mxu0
      %473 = vmatprep.mubr.f32.mxu0 0.0
      %474 = vmatmul.mubr.f32.gmra.mrb[0].mxu0 %v294
      %v475 = vpop.f32.mrb[0].mxu0
      %v476 = vadd.f32 0.0, %v475
      %v477 = vpop.f32.mrb[0].mxu0
      %478 = vmatprep.mubr.f32.mxu0 0.0
      %479 = vmatmul.mubr.f32.gmra.mrb[0].mxu0 %v297
      %v480 = vpop.f32.mrb[0].mxu0
      %v481 = vadd.f32 0.0, %v480
      %v482 = vpop.f32.mrb[0].mxu0
      %483 = vmatprep.mubr.f32.mxu0 0.0
      %484 = vmatmul.mubr.f32.gmra.mrb[0].mxu0 %v300
      %v485 = vpop.f32.mrb[0].mxu0
      %v486 = vadd.f32 0.0, %v485
      %v487 = vpop.f32.mrb[0].mxu0
      %488 = vmatprep.mubr.f32.mxu0 0.0
      %489 = vmatmul.mubr.f32.gmra.mrb[0].mxu0 %v303
      %v490 = vpop.f32.mrb[0].mxu0
      %v491 = vadd.f32 0.0, %v490
      %v492 = vpop.f32.mrb[0].mxu0
      %493 = vmatprep.mubr.f32.mxu0 0.0
      %494 = vmatmul.mubr.f32.gmra.mrb[0].mxu0 %v306
      %v495 = vpop.f32.mrb[0].mxu0
      %v496 = vadd.f32 0.0, %v495
      %v497 = vpop.f32.mrb[0].mxu0
      %498 = vmatprep.mubr.f32.mxu0 0.0
      %499 = vmatmul.mubr.f32.gmra.mrb[0].mxu0 %v309
      %v500 = vpop.f32.mrb[0].mxu0
      %v501 = vadd.f32 0.0, %v500
      %v502 = vpop.f32.mrb[0].mxu0
      %503 = vmatprep.mubr.f32.mxu0 0.0
      %504 = vmatmul.mubr.f32.gmra.mrb[0].mxu0 %v312
      %v505 = vpop.f32.mrb[0].mxu0
      %v506 = vadd.f32 0.0, %v505
      %v507 = vpop.f32.mrb[0].mxu0
      %508 = vmatprep.mubr.f32.mxu0 0.0
      %509 = vmatmul.mubr.f32.gmra.mrb[0].mxu0 %v315
      %v510 = vpop.f32.mrb[0].mxu0
      %v511 = vadd.f32 0.0, %v510
      %v512 = vpop.f32.mrb[0].mxu0
      %513 = vmatprep.mubr.f32.mxu0 0.0
      %514 = vmatmul.mubr.f32.gmra.mrb[0].mxu0 %v318
      %v515 = vpop.f32.mrb[0].mxu0
      %v516 = vadd.f32 0.0, %v515
      %v517 = vpop.f32.mrb[0].mxu0
      %518 = vmatprep.mubr.f32.mxu0 0.0
      %519 = vmatmul.mubr.f32.gmra.mrb[0].mxu0 %v321
      %v520 = vpop.f32.mrb[0].mxu0
      %v521 = vadd.f32 0.0, %v520
      %v522 = vpop.f32.mrb[0].mxu0
      %523 = vmatprep.mubr.f32.mxu0 0.0
      %524 = vmatmul.mubr.f32.gmra.mrb[0].mxu0 %v324
      %v525 = vpop.f32.mrb[0].mxu0
      %v526 = vadd.f32 0.0, %v525
      %v527 = vpop.f32.mrb[0].mxu0
      %528 = vmatprep.mubr.f32.mxu0 0.0
      %529 = vmatmul.mubr.f32.gmra.mrb[0].mxu0 %v327
      %v530 = vpop.f32.mrb[0].mxu0
      %v531 = vadd.f32 0.0, %v530
      %v532 = vpop.f32.mrb[0].mxu0
      %533 = vmatprep.mubr.f32.mxu0 0.0
      %534 = vmatmul.mubr.f32.gmra.mrb[0].mxu0 %v330
      %v535 = vpop.f32.mrb[0].mxu0
      %v536 = vadd.f32 0.0, %v535
      %v537 = vpop.f32.mrb[0].mxu0
      %538 = vmatprep.mubr.f32.mxu0 0.0
      %539 = vmatmul.mubr.f32.gmra.mrb[0].mxu0 %v333
      %v540 = vpop.f32.mrb[0].mxu0
      %v541 = vadd.f32 0.0, %v540
      %v542 = vpop.f32.mrb[0].mxu0
      %543 = vmatprep.mubr.f32.mxu0 0.0
      %544 = vmatmul.mubr.f32.gmra.mrb[0].mxu0 %v336
      %v545 = vpop.f32.mrb[0].mxu0
      %v546 = vadd.f32 0.0, %v545
      %v547 = vpop.f32.mrb[0].mxu0
      %548 = vmatprep.mubr.f32.mxu0 0.0
      %549 = vmatmul.mubr.f32.gmra.mrb[0].mxu0 %v339
      %v550 = vpop.f32.mrb[0].mxu0
      %v551 = vadd.f32 0.0, %v550
      %v552 = vpop.f32.mrb[0].mxu0
      %553 = vmatprep.mubr.f32.mxu0 0.0
      %554 = vmatmul.mubr.f32.gmra.mrb[0].mxu0 %v342
      %v555 = vpop.f32.mrb[0].mxu0
      %v556 = vadd.f32 0.0, %v555
      %v557 = vpop.f32.mrb[0].mxu0
      %558 = vmatprep.mubr.f32.mxu0 0.0
      %559 = vmatmul.mubr.f32.gmra.mrb[0].mxu0 %v345
      %v560 = vpop.f32.mrb[0].mxu0
      %v561 = vadd.f32 0.0, %v560
      %v562 = vpop.f32.mrb[0].mxu0
      %563 = vmatprep.mubr.f32.mxu0 0.0
      %564 = vmatmul.mubr.f32.gmra.mrb[0].mxu0 %v348
      %v565 = vpop.f32.mrb[0].mxu0
      %v566 = vadd.f32 0.0, %v565
      %v567 = vpop.f32.mrb[0].mxu0
      %568 = vmatprep.mubr.f32.mxu0 0.0
      %569 = vmatmul.mubr.f32.gmra.mrb[0].mxu0 %v351
      %v570 = vpop.f32.mrb[0].mxu0
      %v571 = vadd.f32 0.0, %v570
      %v572 = vpop.f32.mrb[0].mxu0
      %573 = vmatprep.mubr.f32.mxu0 0.0
      %574 = vmatmul.mubr.f32.gmra.mrb[0].mxu0 %v354
      %v575 = vpop.f32.mrb[0].mxu0
      %v576 = vadd.f32 0.0, %v575
      %v577 = vpop.f32.mrb[0].mxu0
      %578 = vmatprep.mubr.f32.mxu0 0.0
      %579 = vmatmul.mubr.f32.gmra.mrb[0].mxu0 %v357
      %v580 = vpop.f32.mrb[0].mxu0
      %v581 = vadd.f32 0.0, %v580
      %v582 = vpop.f32.mrb[0].mxu0
      %583 = vdwg.mxu0
      %v584 = vld [vmem:[%s2] sm:$0x1]
      %v586 = vlaneseq
      %v587 = vshrl.u32 %v586, 7
      %v588 = vsub.s32 0, %v587
      %v589 = vrot.slane %v584, %v588
      %v591 = vmul.f32 %v426, %v589
      %v592 = vmul.f32 %v431, %v589
      %v593 = vmul.f32 %v436, %v589
      %v594 = vmul.f32 %v441, %v589
      %v595 = vmul.f32 %v446, %v589
      %v596 = vmul.f32 %v451, %v589
      %v597 = vmul.f32 %v456, %v589
      %v598 = vmul.f32 %v461, %v589
      %v599 = vmul.f32 %v466, %v589
      %v600 = vmul.f32 %v471, %v589
      %v601 = vmul.f32 %v476, %v589
      %v602 = vmul.f32 %v481, %v589
      %v603 = vmul.f32 %v486, %v589
      %v604 = vmul.f32 %v491, %v589
      %v605 = vmul.f32 %v496, %v589
      %v606 = vmul.f32 %v501, %v589
      %v607 = vmul.f32 %v506, %v589
      %v608 = vmul.f32 %v511, %v589
      %v609 = vmul.f32 %v516, %v589
      %v610 = vmul.f32 %v521, %v589
      %v611 = vmul.f32 %v526, %v589
      %v612 = vmul.f32 %v531, %v589
      %v613 = vmul.f32 %v536, %v589
      %v614 = vmul.f32 %v541, %v589
      %v615 = vmul.f32 %v546, %v589
      %v616 = vmul.f32 %v551, %v589
      %v617 = vmul.f32 %v556, %v589
      %v618 = vmul.f32 %v561, %v589
      %v619 = vmul.f32 %v566, %v589
      %v620 = vmul.f32 %v571, %v589
      %v621 = vmul.f32 %v576, %v589
      %v622 = vmul.f32 %v581, %v589
      %v623 = vld [vmem:[%s3] sm:$0x1]
      %v625 = vlaneseq
      %v626 = vshrl.u32 %v625, 7
      %v627 = vsub.s32 0, %v626
      %v628 = vrot.slane %v623, %v627
      %v630 = vadd.f32 %v591, %v628
      %v631 = vadd.f32 %v592, %v628
      %v632 = vadd.f32 %v593, %v628
      %v633 = vadd.f32 %v594, %v628
      %v634 = vadd.f32 %v595, %v628
      %v635 = vadd.f32 %v596, %v628
      %v636 = vadd.f32 %v597, %v628
      %v637 = vadd.f32 %v598, %v628
      %v638 = vadd.f32 %v599, %v628
      %v639 = vadd.f32 %v600, %v628
      %v640 = vadd.f32 %v601, %v628
      %v641 = vadd.f32 %v602, %v628
      %v642 = vadd.f32 %v603, %v628
      %v643 = vadd.f32 %v604, %v628
      %v644 = vadd.f32 %v605, %v628
      %v645 = vadd.f32 %v606, %v628
      %v646 = vadd.f32 %v607, %v628
      %v647 = vadd.f32 %v608, %v628
      %v648 = vadd.f32 %v609, %v628
      %v649 = vadd.f32 %v610, %v628
      %v650 = vadd.f32 %v611, %v628
      %v651 = vadd.f32 %v612, %v628
      %v652 = vadd.f32 %v613, %v628
      %v653 = vadd.f32 %v614, %v628
      %v654 = vadd.f32 %v615, %v628
      %v655 = vadd.f32 %v616, %v628
      %v656 = vadd.f32 %v617, %v628
      %v657 = vadd.f32 %v618, %v628
      %v658 = vadd.f32 %v619, %v628
      %v659 = vadd.f32 %v620, %v628
      %v660 = vadd.f32 %v621, %v628
      %v661 = vadd.f32 %v622, %v628
      %vm662 = vcmp.ge.f32.partialorder %v630, 0.0
      %vm663 = vcmp.ge.f32.partialorder %v631, 0.0
      %vm664 = vcmp.ge.f32.partialorder %v632, 0.0
      %vm665 = vcmp.ge.f32.partialorder %v633, 0.0
      %vm666 = vcmp.ge.f32.partialorder %v634, 0.0
      %vm667 = vcmp.ge.f32.partialorder %v635, 0.0
      %vm668 = vcmp.ge.f32.partialorder %v636, 0.0
      %vm669 = vcmp.ge.f32.partialorder %v637, 0.0
      %vm670 = vcmp.ge.f32.partialorder %v638, 0.0
      %vm671 = vcmp.ge.f32.partialorder %v639, 0.0
      %vm672 = vcmp.ge.f32.partialorder %v640, 0.0
      %vm673 = vcmp.ge.f32.partialorder %v641, 0.0
      %vm674 = vcmp.ge.f32.partialorder %v642, 0.0
      %vm675 = vcmp.ge.f32.partialorder %v643, 0.0
      %vm676 = vcmp.ge.f32.partialorder %v644, 0.0
      %vm677 = vcmp.ge.f32.partialorder %v645, 0.0
      %vm678 = vcmp.ge.f32.partialorder %v646, 0.0
      %vm679 = vcmp.ge.f32.partialorder %v647, 0.0
      %vm680 = vcmp.ge.f32.partialorder %v648, 0.0
      %vm681 = vcmp.ge.f32.partialorder %v649, 0.0
      %vm682 = vcmp.ge.f32.partialorder %v650, 0.0
      %vm683 = vcmp.ge.f32.partialorder %v651, 0.0
      %vm684 = vcmp.ge.f32.partialorder %v652, 0.0
      %vm685 = vcmp.ge.f32.partialorder %v653, 0.0
      %vm686 = vcmp.ge.f32.partialorder %v654, 0.0
      %vm687 = vcmp.ge.f32.partialorder %v655, 0.0
      %vm688 = vcmp.ge.f32.partialorder %v656, 0.0
      %vm689 = vcmp.ge.f32.partialorder %v657, 0.0
      %vm690 = vcmp.ge.f32.partialorder %v658, 0.0
      %vm691 = vcmp.ge.f32.partialorder %v659, 0.0
      %vm692 = vcmp.ge.f32.partialorder %v660, 0.0
      %vm693 = vcmp.ge.f32.partialorder %v661, 0.0
      %v694 = vld [vmem:[%s4] sm:$0x1]
      %v696 = vlaneseq
      %v697 = vshrl.u32 %v696, 7
      %v698 = vsub.s32 0, %v697
      %v699 = vrot.slane %v694, %v698
      %v701 = vmul.f32 %v699, %v630
      %v702 = vmul.f32 %v699, %v631
      %v703 = vmul.f32 %v699, %v632
      %v704 = vmul.f32 %v699, %v633
      %v705 = vmul.f32 %v699, %v634
      %v706 = vmul.f32 %v699, %v635
      %v707 = vmul.f32 %v699, %v636
      %v708 = vmul.f32 %v699, %v637
      %v709 = vmul.f32 %v699, %v638
      %v710 = vmul.f32 %v699, %v639
      %v711 = vmul.f32 %v699, %v640
      %v712 = vmul.f32 %v699, %v641
      %v713 = vmul.f32 %v699, %v642
      %v714 = vmul.f32 %v699, %v643
      %v715 = vmul.f32 %v699, %v644
      %v716 = vmul.f32 %v699, %v645
      %v717 = vmul.f32 %v699, %v646
      %v718 = vmul.f32 %v699, %v647
      %v719 = vmul.f32 %v699, %v648
      %v720 = vmul.f32 %v699, %v649
      %v721 = vmul.f32 %v699, %v650
      %v722 = vmul.f32 %v699, %v651
      %v723 = vmul.f32 %v699, %v652
      %v724 = vmul.f32 %v699, %v653
      %v725 = vmul.f32 %v699, %v654
      %v726 = vmul.f32 %v699, %v655
      %v727 = vmul.f32 %v699, %v656
      %v728 = vmul.f32 %v699, %v657
      %v729 = vmul.f32 %v699, %v658
      %v730 = vmul.f32 %v699, %v659
      %v731 = vmul.f32 %v699, %v660
      %v732 = vmul.f32 %v699, %v661
      %v733 = vsel %vm662, %v630, %v701
      %v734 = vsel %vm663, %v631, %v702
      %v735 = vsel %vm664, %v632, %v703
      %v736 = vsel %vm665, %v633, %v704
      %v737 = vsel %vm666, %v634, %v705
      %v738 = vsel %vm667, %v635, %v706
      %v739 = vsel %vm668, %v636, %v707
      %v740 = vsel %vm669, %v637, %v708
      %v741 = vsel %vm670, %v638, %v709
      %v742 = vsel %vm671, %v639, %v710
      %v743 = vsel %vm672, %v640, %v711
      %v744 = vsel %vm673, %v641, %v712
      %v745 = vsel %vm674, %v642, %v713
      %v746 = vsel %vm675, %v643, %v714
      %v747 = vsel %vm676, %v644, %v715
      %v748 = vsel %vm677, %v645, %v716
      %v749 = vsel %vm678, %v646, %v717
      %v750 = vsel %vm679, %v647, %v718
      %v751 = vsel %vm680, %v648, %v719
      %v752 = vsel %vm681, %v649, %v720
      %v753 = vsel %vm682, %v650, %v721
      %v754 = vsel %vm683, %v651, %v722
      %v755 = vsel %vm684, %v652, %v723
      %v756 = vsel %vm685, %v653, %v724
      %v757 = vsel %vm686, %v654, %v725
      %v758 = vsel %vm687, %v655, %v726
      %v759 = vsel %vm688, %v656, %v727
      %v760 = vsel %vm689, %v657, %v728
      %v761 = vsel %vm690, %v658, %v729
      %v762 = vsel %vm691, %v659, %v730
      %v763 = vsel %vm692, %v660, %v731
      %v764 = vsel %vm693, %v661, %v732
      %vm765 = vcmask 261120
      %766 = vst.msk [vmem:[%s226] sm:$0xff] %vm765, %v733
      %767 = vst.msk [vmem:[%s226 + $0x8] sm:$0xff] %vm765, %v734
      %768 = vst.msk [vmem:[%s226 + $0x10] sm:$0xff] %vm765, %v735
      %769 = vst.msk [vmem:[%s226 + $0x18] sm:$0xff] %vm765, %v736
      %770 = vst.msk [vmem:[%s226 + $0x20] sm:$0xff] %vm765, %v737
      %771 = vst.msk [vmem:[%s226 + $0x28] sm:$0xff] %vm765, %v738
      %772 = vst.msk [vmem:[%s226 + $0x30] sm:$0xff] %vm765, %v739
      %773 = vst.msk [vmem:[%s226 + $0x38] sm:$0xff] %vm765, %v740
      %774 = vst.msk [vmem:[%s226 + $0x40] sm:$0xff] %vm765, %v741
      %775 = vst.msk [vmem:[%s226 + $0x48] sm:$0xff] %vm765, %v742
      %776 = vst.msk [vmem:[%s226 + $0x50] sm:$0xff] %vm765, %v743
      %777 = vst.msk [vmem:[%s226 + $0x58] sm:$0xff] %vm765, %v744
      %778 = vst.msk [vmem:[%s226 + $0x60] sm:$0xff] %vm765, %v745
      %779 = vst.msk [vmem:[%s226 + $0x68] sm:$0xff] %vm765, %v746
      %780 = vst.msk [vmem:[%s226 + $0x70] sm:$0xff] %vm765, %v747
      %781 = vst.msk [vmem:[%s226 + $0x78] sm:$0xff] %vm765, %v748
      %782 = vst.msk [vmem:[%s226 + $0x80] sm:$0xff] %vm765, %v749
      %783 = vst.msk [vmem:[%s226 + $0x88] sm:$0xff] %vm765, %v750
      %784 = vst.msk [vmem:[%s226 + $0x90] sm:$0xff] %vm765, %v751
      %785 = vst.msk [vmem:[%s226 + $0x98] sm:$0xff] %vm765, %v752
      %786 = vst.msk [vmem:[%s226 + $0xa0] sm:$0xff] %vm765, %v753
      %787 = vst.msk [vmem:[%s226 + $0xa8] sm:$0xff] %vm765, %v754
      %788 = vst.msk [vmem:[%s226 + $0xb0] sm:$0xff] %vm765, %v755
      %789 = vst.msk [vmem:[%s226 + $0xb8] sm:$0xff] %vm765, %v756
      %790 = vst.msk [vmem:[%s226 + $0xc0] sm:$0xff] %vm765, %v757
      %791 = vst.msk [vmem:[%s226 + $0xc8] sm:$0xff] %vm765, %v758
      %792 = vst.msk [vmem:[%s226 + $0xd0] sm:$0xff] %vm765, %v759
      %793 = vst.msk [vmem:[%s226 + $0xd8] sm:$0xff] %vm765, %v760
      %794 = vst.msk [vmem:[%s226 + $0xe0] sm:$0xff] %vm765, %v761
      %795 = vst.msk [vmem:[%s226 + $0xe8] sm:$0xff] %vm765, %v762
      %796 = vst.msk [vmem:[%s226 + $0xf0] sm:$0xff] %vm765, %v763
      %797 = vst.msk [vmem:[%s226 + $0xf8] sm:$0xff] %vm765, %v764
      %s798 = smul.u32 32, %s16
      %p799 = scmp.lt.s32.totalorder %s798, 63
      %s800 = scalar_select %p799, %s798, 63
      %s801 = smul.addr %s800, 8
      %s802 = scalar_lea.vmem %s5, %s801
      // Predicated region
      $region41: #{tpu_custom_call.1} parent=39 // pred_check
        %p803 = pneg %p144
      $region42: #{tpu_custom_call.1} parent=39 // pred_check_branch
        %805 = sbr.rel (%p803) target = $region44
      $region43: #{tpu_custom_call.1} parent=39 // pred_region
        %s806 = smul.u32 32, %s16
      $region44: #{tpu_custom_call.1} parent=39 // pred_fallthru
        _
    $region40: #{tpu_custom_call.1} parent=5 // pred_fallthru
      _
    %p807 = scmp.le.s32.totalorder 2, %s11
    // Predicated region
    $region45: #{tpu_custom_call.1} parent=5 // pred_check
      %p808 = pneg %p807
    $region46: #{tpu_custom_call.1} parent=5 // pred_check_branch
      %810 = sbr.rel (%p808) target = $region48
    $region47: #{tpu_custom_call.1} parent=5 // pred_region
      %s811 = ssub.s32 %s11, 2
      // Predicated region
      $region49: #{tpu_custom_call.1} parent=47 // pred_check
        %p812 = pneg %p150
      $region50: #{tpu_custom_call.1} parent=47 // pred_check_branch
        %814 = sbr.rel (%p812) target = $region52
      $region51: #{tpu_custom_call.1} parent=47 // pred_region
        %s815 = smul.u32 32, %s17
        %p816 = scmp.lt.s32.totalorder %s815, 63
        %s817 = scalar_select %p816, %s815, 63
        %s818 = smul.addr %s817, 8
        %s819 = scalar_lea.vmem %s5, %s818
      $region52: #{tpu_custom_call.1} parent=47 // pred_fallthru
        _
    $region48: #{tpu_custom_call.1} parent=5 // pred_fallthru
      _
  $region6: #{tpu_custom_call.1} parent=0 // loop_footer
    %s15 = sadd.s32 1, %s11
  $region7: #{tpu_custom_call.1} parent=0 // loop_footer_branch
    %10 = sbr.rel target = $region3
  $region8: #{tpu_custom_call.1} parent=0 // loop_exit
    _

</llo_original>
